<compile_context>
chip_gen: v7x
topology: tpu7x:2x2x1
jax: 0.10.0
libtpu: 0.0.40
codegen_flags: <defaults>
</compile_context>

<pallas_src>
import functools
import math

import jax
import jax.numpy as jnp
from jax.experimental import pallas as pl
from jax.experimental.pallas import tpu as pltpu

_LANE = 128
_SUBLANE = 8
_ACC_BUDGET_BYTES = 1 << 20     # per f32 accumulator plane (bounds tile_h)
_BLOCK_BUDGET_BYTES = 2 << 20   # per input block at native dtype (x2 inputs x2 buffers)


def _round_up(x, m):
    return (x + m - 1) // m * m


# ------------------------------ Pallas kernel -------------------------------

def _make_kernel(B, H, W, TB, TH, n_h):
    need_bmask = (B % TB) != 0
    need_hmask = (H % TH) != 0
    multi_h = n_h > 1

    def kernel(p_ref, t_ref, o_ref, acc_x_ref, acc_y_ref, carry_ref):
        b = pl.program_id(0)
        h = pl.program_id(1)

        @pl.when(h == 0)
        def _init():
            acc_x_ref[...] = jnp.zeros_like(acc_x_ref)
            acc_y_ref[...] = jnp.zeros_like(acc_y_ref)

        # Upcast in-kernel; inputs stream from HBM at native width.
        d = p_ref[...].astype(jnp.float32) - t_ref[...].astype(jnp.float32)  # (TB, TH, W)

        if need_bmask:
            bix = jax.lax.broadcasted_iota(jnp.int32, (TB, 1, 1), 0)
            bmask = (b * TB + bix) < B
        else:
            bmask = None

        # |gradient along H| inside the block: row pairs (i, i+1), i = 0 .. TH-2.
        ax = jnp.abs(d[:, 1:, :] - d[:, :-1, :])                     # (TB, TH-1, W)
        if need_hmask:
            rix = jax.lax.broadcasted_iota(jnp.int32, (1, TH - 1, 1), 1)
            mx = (h * TH + rix) < (H - 1)
            mx = mx if bmask is None else (mx & bmask)
            ax = jnp.where(mx, ax, 0.0)
        elif bmask is not None:
            ax = jnp.where(bmask, ax, 0.0)
        acc_x_ref[0:TH - 1, :] += jnp.sum(ax, axis=0)                # cheap vreg adds

        # |gradient along W|: column pairs (j, j+1), j = 0 .. W-2 (W is never tiled).
        ay = jnp.abs(d[:, :, 1:] - d[:, :, :-1])                     # (TB, TH, W-1)
        if need_hmask:
            riy = jax.lax.broadcasted_iota(jnp.int32, (1, TH, 1), 1)
            my = (h * TH + riy) < H
            my = my if bmask is None else (my & bmask)
            ay = jnp.where(my, ay, 0.0)
        elif bmask is not None:
            ay = jnp.where(bmask, ay, 0.0)
        acc_y_ref[:, 0:W - 1] += jnp.sum(ay, axis=0)

        if multi_h:
            # Seam between consecutive H blocks: 1-row halo carried through VMEM scratch.
            @pl.when(h > 0)
            def _seam():
                s = jnp.abs(d[:, 0:1, :] - carry_ref[...])           # (TB, 1, W)
                if need_bmask:
                    s = jnp.where(bmask, s, 0.0)
                acc_x_ref[TH - 1:TH, :] += jnp.sum(s, axis=0)        # spare acc row
            carry_ref[...] = d[:, TH - 1:TH, :]

        # Single cross-lane/sublane reduce per batch tile, at the last H step.
        @pl.when(h == n_h - 1)
        def _finalize():
            sx = jnp.sum(acc_x_ref[...])
            sy = jnp.sum(acc_y_ref[...])
            lane = jax.lax.broadcasted_iota(jnp.int32, (1, 1, _LANE), 2)
            o_ref[...] = jnp.where(lane == 0, sx, jnp.where(lane == 1, sy, 0.0))

    return kernel


# -------------------------------- Wrapper ------------------------------------

def gradient_loss(predict, target, *, tile_b=None, tile_h=None):
    """GradientLoss.forward: predict/target shaped (..., H, W), identical shapes."""
    assert predict.shape == target.shape, "predict/target must have identical shapes"
    *lead, H, W = predict.shape
    assert H >= 2 and W >= 2, "GradientLoss needs spatial dims >= 2"
    B = int(math.prod(lead)) if lead else 1

    p = predict.reshape(B, H, W)
    t = target.reshape(B, H, W)
    elt = p.dtype.itemsize
    w_pad = _round_up(W, _LANE)

    # H tile: full image if the f32 accumulator plane stays small, otherwise a
    # multiple-of-8 row tile so blocks stay bounded for arbitrarily large frames.
    if tile_h is None:
        if H * w_pad * 4 <= _ACC_BUDGET_BYTES:
            tile_h = H
        else:
            tile_h = max(_SUBLANE,
                         (_ACC_BUDGET_BYTES // (w_pad * 4)) // _SUBLANE * _SUBLANE)
            tile_h = min(tile_h, H)
    assert tile_h == H or (tile_h < H and tile_h % _SUBLANE == 0), "bad tile_h"
    n_h = pl.cdiv(H, tile_h)

    # Batch tile: sized from a layout-aware (sublane/lane padded) VMEM budget.
    if tile_b is None:
        blk_bytes_per_img = _round_up(tile_h, _SUBLANE) * w_pad * elt
        tile_b = max(1, _BLOCK_BUDGET_BYTES // blk_bytes_per_img)
        tile_b = min(tile_b, B)
        if B >= 2:
            # Keep >= 2 batch tiles so the "parallel" axis can shard across the two
            # TensorCores on v7x (one extra ~0.35us grid step elsewhere).
            tile_b = min(tile_b, pl.cdiv(B, 2))
    tile_b = max(1, min(tile_b, B))
    n_b = pl.cdiv(B, tile_b)

    kernel = _make_kernel(B, H, W, tile_b, tile_h, n_h)

    out = pl.pallas_call(
        kernel,
        out_shape=jax.ShapeDtypeStruct((n_b, 1, _LANE), jnp.float32),
        grid=(n_b, n_h),
        in_specs=[
            pl.BlockSpec((tile_b, tile_h, W), lambda b, h: (b, h, 0)),
            pl.BlockSpec((tile_b, tile_h, W), lambda b, h: (b, h, 0)),
        ],
        out_specs=pl.BlockSpec((1, 1, _LANE), lambda b, h: (b, 0, 0)),
        scratch_shapes=[
            pltpu.VMEM((tile_h, W), jnp.float32),     # acc_x  (|grad_H| partial sums)
            pltpu.VMEM((tile_h, W), jnp.float32),     # acc_y  (|grad_W| partial sums)
            pltpu.VMEM((tile_b, 1, W), jnp.float32),  # carried last row of d (H seam)
        ],
        compiler_params=pltpu.CompilerParams(
            dimension_semantics=("parallel", "arbitrary"),
            vmem_limit_bytes=32 * 1024 * 1024,
        ),
        cost_estimate=pl.CostEstimate(
            flops=8 * B * H * W,
            transcendentals=0,
            bytes_accessed=2 * B * H * W * elt + n_b * _LANE * 4,
        ),
    )(p, t)

    sums = jnp.sum(out[:, 0, :2], axis=0)          # (2,) = [sum|gx|, sum|gy|]
    # nn.L1Loss uses 'mean' per gradient tensor; the two have different element counts.
    n_x = B * (H - 1) * W
    n_y = B * H * (W - 1)
    return sums[0] / n_x + sums[1] / n_y


# ---------------------------------- Main --------------------------------------

if __name__ == "__main__":
    key = jax.random.PRNGKey(0)
    k0, k1, k2, k3 = jax.random.split(key, 4)

    def _ref(p, t):
        gxp = p[..., 1:, :] - p[..., :-1, :]
        gyp = p[..., 1:] - p[..., :-1]
        gxt = t[..., 1:, :] - t[..., :-1, :]
        gyt = t[..., 1:] - t[..., :-1]
        return jnp.mean(jnp.abs(gxp - gxt)) + jnp.mean(jnp.abs(gyp - gyt))

    # Primary check: NCHW batch=2, channels=4, 16x16 (single H tile, no masking).
    x = jax.random.uniform(k0, (2, 4, 16, 16), jnp.float32)
    y = jax.random.uniform(k1, (2, 4, 16, 16), jnp.float32)
    out = jax.block_until_ready(jax.jit(gradient_loss)(x, y))
    exp = _ref(x, y)
    assert out.shape == () and bool(jnp.isfinite(out))
    assert bool(jnp.allclose(out, exp, rtol=1e-5, atol=1e-6)), (out, exp)

    # Secondary check: ragged batch tiles + forced H tiling exercises the halo-carry
    # and the batch/row masking paths at a small size.
    a = jax.random.uniform(k2, (3, 5, 20, 24), jnp.float32)
    b = jax.random.uniform(k3, (3, 5, 20, 24), jnp.float32)
    out2 = jax.block_until_ready(jax.jit(functools.partial(gradient_loss, tile_h=8))(a, b))
    exp2 = _ref(a, b)
    assert bool(jnp.allclose(out2, exp2, rtol=1e-5, atol=1e-6)), (out2, exp2)

    print("KERNEL_OK")
</pallas_src>

<mosaic_0001>
module attributes {stable_mosaic.version = 11 : i64} {
  func.func @kernel(%arg0: i32, %arg1: i32, %arg2: memref<4x16x16xf32, #tpu.memory_space<vmem>>, %arg3: memref<4x16x16xf32, #tpu.memory_space<vmem>>, %arg4: memref<1x1x128xf32, #tpu.memory_space<vmem>>, %arg5: memref<16x16xf32, #tpu.memory_space<vmem>>, %arg6: memref<16x16xf32, #tpu.memory_space<vmem>>, %arg7: memref<4x1x16xf32, #tpu.memory_space<vmem>>) attributes {dimension_semantics = [#tpu.dimension_semantics<parallel>, #tpu.dimension_semantics<arbitrary>], iteration_bounds = array<i64: 2, 1>, scalar_prefetch = 0 : i64, scratch_operands = 3 : i64, tpu.core_type = #tpu.core_type<tc>, window_params = [{transform_indices = @transform_0, window_bounds = array<i64: 4, 16, 16>}, {transform_indices = @transform_1, window_bounds = array<i64: 4, 16, 16>}, {transform_indices = @transform_2, window_bounds = array<i64: 1, 1, 128>}]} {
    %c0_i32 = arith.constant 0 : i32
    %0 = arith.cmpi eq, %arg1, %c0_i32 : i32
    %1 = arith.extui %0 : i1 to i32
    %c0_i32_0 = arith.constant 0 : i32
    %2 = arith.cmpi ne, %1, %c0_i32_0 : i32
    scf.if %2 {
      %cst_17 = arith.constant 0.000000e+00 : f32
      %25 = vector.broadcast %cst_17 : f32 to vector<16x16xf32>
      %c0_18 = arith.constant 0 : index
      %c0_19 = arith.constant 0 : index
      %26 = vector.load %arg5[%c0_18, %c0_19] : memref<16x16xf32, #tpu.memory_space<vmem>>, vector<16x16xf32>
      tpu.vector_store %arg5[%c0_18, %c0_19], %25 {strides = array<i32>} : memref<16x16xf32, #tpu.memory_space<vmem>>, vector<16x16xf32>,
      %cst_20 = arith.constant 0.000000e+00 : f32
      %27 = vector.broadcast %cst_20 : f32 to vector<16x16xf32>
      %c0_21 = arith.constant 0 : index
      %c0_22 = arith.constant 0 : index
      %28 = vector.load %arg6[%c0_21, %c0_22] : memref<16x16xf32, #tpu.memory_space<vmem>>, vector<16x16xf32>
      tpu.vector_store %arg6[%c0_21, %c0_22], %27 {strides = array<i32>} : memref<16x16xf32, #tpu.memory_space<vmem>>, vector<16x16xf32>,
    } else {
    }
    %c0 = arith.constant 0 : index
    %c0_1 = arith.constant 0 : index
    %c0_2 = arith.constant 0 : index
    %3 = vector.load %arg2[%c0, %c0_1, %c0_2] : memref<4x16x16xf32, #tpu.memory_space<vmem>>, vector<4x16x16xf32>
    %c0_3 = arith.constant 0 : index
    %c0_4 = arith.constant 0 : index
    %c0_5 = arith.constant 0 : index
    %4 = vector.load %arg3[%c0_3, %c0_4, %c0_5] : memref<4x16x16xf32, #tpu.memory_space<vmem>>, vector<4x16x16xf32>
    %5 = arith.subf %3, %4 : vector<4x16x16xf32>
    %6 = vector.extract_strided_slice %5 {offsets = [0, 1, 0], sizes = [4, 15, 16], strides = [1, 1, 1]} : vector<4x16x16xf32> to vector<4x15x16xf32>
    %7 = vector.extract_strided_slice %5 {offsets = [0, 0, 0], sizes = [4, 15, 16], strides = [1, 1, 1]} : vector<4x16x16xf32> to vector<4x15x16xf32>
    %8 = arith.subf %6, %7 : vector<4x15x16xf32>
    %9 = math.absf %8 : vector<4x15x16xf32>
    %c0_6 = arith.constant 0 : index
    %c0_7 = arith.constant 0 : index
    %10 = vector.load %arg5[%c0_6, %c0_7] : memref<16x16xf32, #tpu.memory_space<vmem>>, vector<15x16xf32>
    %cst = arith.constant dense<0.000000e+00> : vector<15x16xf32>
    %11 = vector.multi_reduction <add>, %9, %cst [0] : vector<4x15x16xf32> to vector<15x16xf32>
    %12 = arith.addf %10, %11 : vector<15x16xf32>
    %c0_8 = arith.constant 0 : index
    %c0_9 = arith.constant 0 : index
    %13 = vector.load %arg5[%c0_8, %c0_9] : memref<16x16xf32, #tpu.memory_space<vmem>>, vector<15x16xf32>
    tpu.vector_store %arg5[%c0_8, %c0_9], %12 {strides = array<i32>} : memref<16x16xf32, #tpu.memory_space<vmem>>, vector<15x16xf32>,
    %14 = vector.extract_strided_slice %5 {offsets = [0, 0, 1], sizes = [4, 16, 15], strides = [1, 1, 1]} : vector<4x16x16xf32> to vector<4x16x15xf32>
    %15 = vector.extract_strided_slice %5 {offsets = [0, 0, 0], sizes = [4, 16, 15], strides = [1, 1, 1]} : vector<4x16x16xf32> to vector<4x16x15xf32>
    %16 = arith.subf %14, %15 : vector<4x16x15xf32>
    %17 = math.absf %16 : vector<4x16x15xf32>
    %c0_10 = arith.constant 0 : index
    %c0_11 = arith.constant 0 : index
    %18 = vector.load %arg6[%c0_10, %c0_11] : memref<16x16xf32, #tpu.memory_space<vmem>>, vector<16x15xf32>
    %cst_12 = arith.constant dense<0.000000e+00> : vector<16x15xf32>
    %19 = vector.multi_reduction <add>, %17, %cst_12 [0] : vector<4x16x15xf32> to vector<16x15xf32>
    %20 = arith.addf %18, %19 : vector<16x15xf32>
    %c0_13 = arith.constant 0 : index
    %c0_14 = arith.constant 0 : index
    %21 = vector.load %arg6[%c0_13, %c0_14] : memref<16x16xf32, #tpu.memory_space<vmem>>, vector<16x15xf32>
    tpu.vector_store %arg6[%c0_13, %c0_14], %20 {strides = array<i32>} : memref<16x16xf32, #tpu.memory_space<vmem>>, vector<16x15xf32>,
    %c0_i32_15 = arith.constant 0 : i32
    %22 = arith.cmpi eq, %arg1, %c0_i32_15 : i32
    %23 = arith.extui %22 : i1 to i32
    %c0_i32_16 = arith.constant 0 : i32
    %24 = arith.cmpi ne, %23, %c0_i32_16 : i32
    scf.if %24 {
      %c0_17 = arith.constant 0 : index
      %c0_18 = arith.constant 0 : index
      %25 = vector.load %arg5[%c0_17, %c0_18] : memref<16x16xf32, #tpu.memory_space<vmem>>, vector<16x16xf32>
      %26 = vector.shape_cast %25 : vector<16x16xf32> to vector<1x16x16xf32>
      %cst_19 = arith.constant dense<0.000000e+00> : vector<1xf32>
      %27 = vector.multi_reduction <add>, %26, %cst_19 [1, 2] : vector<1x16x16xf32> to vector<1xf32>
      %28 = vector.shape_cast %27 : vector<1xf32> to vector<1x1x1xf32>
      %29 = vector.extract %28[0, 0, 0] : f32 from vector<1x1x1xf32>
      %c0_20 = arith.constant 0 : index
      %c0_21 = arith.constant 0 : index
      %30 = vector.load %arg6[%c0_20, %c0_21] : memref<16x16xf32, #tpu.memory_space<vmem>>, vector<16x16xf32>
      %31 = vector.shape_cast %30 : vector<16x16xf32> to vector<1x16x16xf32>
      %cst_22 = arith.constant dense<0.000000e+00> : vector<1xf32>
      %32 = vector.multi_reduction <add>, %31, %cst_22 [1, 2] : vector<1x16x16xf32> to vector<1xf32>
      %33 = vector.shape_cast %32 : vector<1xf32> to vector<1x1x1xf32>
      %34 = vector.extract %33[0, 0, 0] : f32 from vector<1x1x1xf32>
      %35 = tpu.iota {dimensions = array<i32: 2>} : vector<1x1x128xi32>
      %c0_i32_23 = arith.constant 0 : i32
      %36 = vector.broadcast %c0_i32_23 : i32 to vector<1x1x128xi32>
      %37 = arith.cmpi eq, %35, %36 : vector<1x1x128xi32>
      %c1_i32 = arith.constant 1 : i32
      %38 = vector.broadcast %c1_i32 : i32 to vector<1x1x128xi32>
      %39 = arith.cmpi eq, %35, %38 : vector<1x1x128xi32>
      %cst_24 = arith.constant 0.000000e+00 : f32
      %40 = vector.broadcast %34 : f32 to vector<1x1x128xf32>
      %41 = vector.broadcast %cst_24 : f32 to vector<1x1x128xf32>
      %42 = arith.select %39, %40, %41 : vector<1x1x128xi1>, vector<1x1x128xf32>
      %43 = vector.broadcast %29 : f32 to vector<1x1x128xf32>
      %44 = arith.select %37, %43, %42 : vector<1x1x128xi1>, vector<1x1x128xf32>
      %c0_25 = arith.constant 0 : index
      %c0_26 = arith.constant 0 : index
      %c0_27 = arith.constant 0 : index
      %45 = vector.load %arg4[%c0_25, %c0_26, %c0_27] : memref<1x1x128xf32, #tpu.memory_space<vmem>>, vector<1x1x128xf32>
      tpu.vector_store %arg4[%c0_25, %c0_26, %c0_27], %44 {strides = array<i32>} : memref<1x1x128xf32, #tpu.memory_space<vmem>>, vector<1x1x128xf32>,
    } else {
    }
    return
  }
  func.func @transform_0(%arg0: i32, %arg1: i32) -> (i32, i32, i32) {
    %c0_i32 = arith.constant 0 : i32
    %c0_i32_0 = arith.constant 0 : i32
    return %arg0, %arg1, %c0_i32 : i32, i32, i32
  }
  func.func @transform_1(%arg0: i32, %arg1: i32) -> (i32, i32, i32) {
    %c0_i32 = arith.constant 0 : i32
    %c0_i32_0 = arith.constant 0 : i32
    return %arg0, %arg1, %c0_i32 : i32, i32, i32
  }
  func.func @transform_2(%arg0: i32, %arg1: i32) -> (i32, i32, i32) {
    %c0_i32 = arith.constant 0 : i32
    %c0_i32_0 = arith.constant 0 : i32
    %c0_i32_1 = arith.constant 0 : i32
    return %arg0, %c0_i32, %c0_i32_0 : i32, i32, i32
  }
}

</mosaic_0001>

<llo_original>
// kernel: gradient_loss.1
$region0: #{gradient_loss.1}
  #allocation0 [shape = 'u32[]', space=smem, size = 0x4, offset = 0x4, fixed_abs, tag = 'smem constant byte address 0x4 - core index']
  #allocation1 [shape = 'u32[144,128]{1,0:T(1,128)}', space=vmem, size = 0x12000, scoped, tag = 'internal scratch']
  #allocation2 [shape = 'f32[16,16]{1,0:T(8,128)}', space=vmem, size = 0x2000, scoped, tag = 'scratch operand']
  #allocation3 [shape = 'f32[16,16]{1,0:T(8,128)}', space=vmem, size = 0x2000, scoped, tag = 'scratch operand']
  #allocation4 [shape = 'f32[4,1,16]{2,1,0:T(1,128)}', space=vmem, size = 0x800, scoped, tag = 'scratch operand']
  %s0 = inlined_call_operand.hbm [shape: f32[8,16,16], index: 0, kind: input, shape index: {}]
  %s1 = inlined_call_operand.hbm [shape: f32[8,16,16], index: 1, kind: input, shape index: {}]
  %s2 = inlined_call_operand.vmem [shape: f32[2,1,128], index: 2, kind: output, shape index: {}]
  %s3 = sld [smem:[#allocation0]]
  $region57: #{gradient_loss.1} parent=0
    _
  %s5 = ssub.s32 1, %s3
  %s6 = scalar_select 0, %s5, %s3
  $region1: #{gradient_loss.1} parent=0
    #allocation5 [shape = 'u8[65536]{0}', space=vmem, size = 0x10000, scoped, tag = 'input window, operand 0']
    #allocation6 [shape = 's32[2]{0}', space=sflag, size = 0x8, scoped, tag = 'scoped memory for gradient_loss.1']
    #allocation7 [shape = 'u8[65536]{0}', space=vmem, size = 0x10000, scoped, tag = 'input window, operand 1']
    #allocation8 [shape = 's32[2]{0}', space=sflag, size = 0x8, scoped, tag = 'scoped memory for gradient_loss.1']
    %7 = vsyncpa [#allocation6], 0
    %s8 = scalar_lea.sflag [#allocation6], 1
    %9 = vsyncpa %s8, 0
    %10 = vsyncpa [#allocation8], 0
    %s11 = scalar_lea.sflag [#allocation8], 1
    %12 = vsyncpa %s11, 0
    loop: start=0, step=1, limit=4
    $region2: #{gradient_loss.1} parent=1 // loop_pre_header
      _
    $region3: #{gradient_loss.1} parent=1 // loop_header
      %s14 = sphi 0, %s18
      %p15 = scmp.ge.s32.totalorder %s14, 4
      %s21 = sphi 0, %s33
      %s22 = sphi 0, %s29
      %s23 = sphi 0, %s21
      %s24 = sphi 0, %s22
      %s25 = sphi 0, %s23
      %s26 = sphi 0, %s24
      %s38 = sphi 0, %s40
      %s41 = sphi 0, %s38
      %s42 = sphi 0, %s41
      %s58 = sphi 0, %s42
      %s66 = sphi 0, %s68
      %s69 = sphi 0, %s66
      %s70 = sphi 0, %s69
      %s86 = sphi 0, %s70
      %s92 = sphi 0, %s94
      %s95 = sphi 0, %s92
      %s96 = sphi 0, %s95
      %s112 = sphi 0, %s96
    $region4: #{gradient_loss.1} parent=1 // loop_header_branch
      %17 = sbr.rel (%p15) target = $region8
    $region5: #{gradient_loss.1} parent=1 // loop_body
      %s19 = ssub.s32 %s14, 1
      %s20 = ssub.s32 %s14, 2
      %s27 = sadd.s32 1, %s22
      %p28 = scmp.ge.s32.totalorder %s27, 1
      %s29 = scalar_select %p28, 0, %s27
      %s30 = sadd.s32 1, %s21
      %s31 = scalar_select %p28, %s30, %s21
      %p32 = scmp.ge.s32.totalorder %s31, 2
      %s33 = scalar_select %p32, 0, %s31
      %s34 = ssub.s32 %s21, %s33
      %s35 = ssub.s32 %s22, %s29
      %s36 = sor.u32 %s34, %s35
      %p37 = scmp.eq.s32.totalorder %s36, 0
      %s39 = sadd.s32 %s38, 1
      %s40 = scalar_select %p37, %s38, %s39
      %p43 = pneg %p37
      %p44 = scmp.eq.s32.totalorder %s14, 1
      %p45 = por %p43, %p44
      %p46 = scmp.ne.s32.totalorder %s38, %s41
      %p47 = scmp.eq.s32.totalorder %s14, 0
      %p48 = por %p46, %p47
      %p49 = scmp.ne.s32.totalorder %s38, %s41
      %p50 = scmp.eq.s32.totalorder %s19, 1
      %p51 = por %p49, %p50
      %p52 = scmp.ne.s32.totalorder %s41, %s42
      %p53 = scmp.eq.s32.totalorder %s19, 0
      %p54 = por %p52, %p53
      %p55 = scmp.ne.s32.totalorder %s41, %s42
      %p56 = scmp.eq.s32.totalorder %s20, 1
      %p57 = por %p55, %p56
      %p59 = scmp.ne.s32.totalorder %s42, %s58
      %p60 = scmp.eq.s32.totalorder %s20, 0
      %p61 = por %p59, %p60
      %s62 = ssub.s32 %s21, %s33
      %s63 = ssub.s32 %s22, %s29
      %s64 = sor.u32 %s62, %s63
      %p65 = scmp.eq.s32.totalorder %s64, 0
      %s67 = sadd.s32 %s66, 1
      %s68 = scalar_select %p65, %s66, %s67
      %p71 = pneg %p65
      %p72 = scmp.eq.s32.totalorder %s14, 1
      %p73 = por %p71, %p72
      %p74 = scmp.ne.s32.totalorder %s66, %s69
      %p75 = scmp.eq.s32.totalorder %s14, 0
      %p76 = por %p74, %p75
      %p77 = scmp.ne.s32.totalorder %s66, %s69
      %p78 = scmp.eq.s32.totalorder %s19, 1
      %p79 = por %p77, %p78
      %p80 = scmp.ne.s32.totalorder %s69, %s70
      %p81 = scmp.eq.s32.totalorder %s19, 0
      %p82 = por %p80, %p81
      %p83 = scmp.ne.s32.totalorder %s69, %s70
      %p84 = scmp.eq.s32.totalorder %s20, 1
      %p85 = por %p83, %p84
      %p87 = scmp.ne.s32.totalorder %s70, %s86
      %p88 = scmp.eq.s32.totalorder %s20, 0
      %p89 = por %p87, %p88
      %s90 = ssub.s32 %s21, %s33
      %p91 = scmp.eq.s32.totalorder %s90, 0
      %s93 = sadd.s32 %s92, 1
      %s94 = scalar_select %p91, %s92, %s93
      %p97 = pneg %p91
      %p98 = scmp.eq.s32.totalorder %s14, 1
      %p99 = por %p97, %p98
      %p100 = scmp.ne.s32.totalorder %s92, %s95
      %p101 = scmp.eq.s32.totalorder %s14, 0
      %p102 = por %p100, %p101
      %p103 = scmp.ne.s32.totalorder %s92, %s95
      %p104 = scmp.eq.s32.totalorder %s19, 1
      %p105 = por %p103, %p104
      %p106 = scmp.ne.s32.totalorder %s95, %s96
      %p107 = scmp.eq.s32.totalorder %s19, 0
      %p108 = por %p106, %p107
      %p109 = scmp.ne.s32.totalorder %s95, %s96
      %p110 = scmp.eq.s32.totalorder %s20, 1
      %p111 = por %p109, %p110
      %p113 = scmp.ne.s32.totalorder %s96, %s112
      %p114 = scmp.eq.s32.totalorder %s20, 0
      %p115 = por %p113, %p114
      %p116 = scmp.le.s32.totalorder 1, %s14
      %p117 = scmp.lt.s32.totalorder %s14, 3
      %p118 = pnand %p116, %p117
      %p119 = pneg %p118
      // Predicated region
      $region9: #{gradient_loss.1} parent=5 // pred_check
        _
      $region10: #{gradient_loss.1} parent=5 // pred_check_branch
        %121 = sbr.rel (%p118) target = $region12
      $region11: #{gradient_loss.1} parent=5 // pred_region
        %s122 = ssub.s32 %s14, 1
      $region12: #{gradient_loss.1} parent=5 // pred_fallthru
        _
      %p123 = scmp.lt.s32.totalorder %s14, 2
      // Predicated region
      $region13: #{gradient_loss.1} parent=5 // pred_check
        %p124 = pneg %p123
      $region14: #{gradient_loss.1} parent=5 // pred_check_branch
        %126 = sbr.rel (%p124) target = $region16
      $region15: #{gradient_loss.1} parent=5 // pred_region
        // Predicated region
        $region17: #{gradient_loss.1} parent=15 // pred_check
          %p127 = pneg %p48
        $region18: #{gradient_loss.1} parent=15 // pred_check_branch
          %129 = sbr.rel (%p127) target = $region20
        $region19: #{gradient_loss.1} parent=15 // pred_region
          %s130 = sand.u32 %s38, 1
          %s131 = scalar_lea.sflag [#allocation6], %s130
          %s132 = sand.u32 %s38, 1
          %s133 = smul.addr %s132, 64
          %s134 = scalar_lea.vmem [#allocation5], %s133
          %s135 = smul.u32 4, %s21
          %s136 = smul.u32 2, %s22
          %s138 = ssub.s32 1024, 1024
          %139 = vsyncadd %s131, %s138
          %s140 = smul.addr %s135, 2
          %s141 = sadd.s32 %s136, %s140
          %s142 = smul.addr %s141, 128
          %s143 = scalar_lea.hbm %s0, %s142
          %s144 = sshll.u32 %s134, 4
          %s145 = int_to_ptr.vmem [resolvable:$true] %s144
          %150 = dma.hbm_to_vmem [thread:$0]  %s143, 1024, %s145, %s131, 128, 128, 8
        $region20: #{gradient_loss.1} parent=15 // pred_fallthru
          _
        // Predicated region
        $region21: #{gradient_loss.1} parent=15 // pred_check
          %p151 = pneg %p76
        $region22: #{gradient_loss.1} parent=15 // pred_check_branch
          %153 = sbr.rel (%p151) target = $region24
        $region23: #{gradient_loss.1} parent=15 // pred_region
          %s154 = sand.u32 %s66, 1
          %s155 = scalar_lea.sflag [#allocation8], %s154
          %s156 = sand.u32 %s66, 1
          %s157 = smul.addr %s156, 64
          %s158 = scalar_lea.vmem [#allocation7], %s157
          %s159 = smul.u32 4, %s21
          %s160 = smul.u32 2, %s22
          %s162 = ssub.s32 1024, 1024
          %163 = vsyncadd %s155, %s162
          %s164 = smul.addr %s159, 2
          %s165 = sadd.s32 %s160, %s164
          %s166 = smul.addr %s165, 128
          %s167 = scalar_lea.hbm %s1, %s166
          %s168 = sshll.u32 %s158, 4
          %s169 = int_to_ptr.vmem [resolvable:$true] %s168
          %174 = dma.hbm_to_vmem [thread:$0]  %s167, 1024, %s169, %s155, 128, 128, 8
        $region24: #{gradient_loss.1} parent=15 // pred_fallthru
          _
      $region16: #{gradient_loss.1} parent=5 // pred_fallthru
        _
      %p175 = scmp.le.s32.totalorder 1, %s14
      %p176 = scmp.lt.s32.totalorder %s14, 3
      %p177 = pnand %p175, %p176
      %p178 = pneg %p177
      // Predicated region
      $region25: #{gradient_loss.1} parent=5 // pred_check
        _
      $region26: #{gradient_loss.1} parent=5 // pred_check_branch
        %180 = sbr.rel (%p177) target = $region28
      $region27: #{gradient_loss.1} parent=5 // pred_region
        %s181 = ssub.s32 %s14, 1
        %s182 = sand.u32 %s41, 1
        %s183 = scalar_lea.sflag [#allocation6], %s182
        %s184 = sand.u32 %s41, 1
        %s185 = smul.addr %s184, 64
        %s186 = scalar_lea.vmem [#allocation5], %s185
        // Predicated region
        $region29: #{gradient_loss.1} parent=27 // pred_check
          %p187 = pneg %p54
        $region30: #{gradient_loss.1} parent=27 // pred_check_branch
          %189 = sbr.rel (%p187) target = $region32
        $region31: #{gradient_loss.1} parent=27 // pred_region
          %190 = dma.done %s183, 1024
        $region32: #{gradient_loss.1} parent=27 // pred_fallthru
          _
        %s191 = sand.u32 %s69, 1
        %s192 = scalar_lea.sflag [#allocation8], %s191
        %s193 = sand.u32 %s69, 1
        %s194 = smul.addr %s193, 64
        %s195 = scalar_lea.vmem [#allocation7], %s194
        // Predicated region
        $region33: #{gradient_loss.1} parent=27 // pred_check
          %p196 = pneg %p82
        $region34: #{gradient_loss.1} parent=27 // pred_check_branch
          %198 = sbr.rel (%p196) target = $region36
        $region35: #{gradient_loss.1} parent=27 // pred_region
          %199 = dma.done %s192, 1024
        $region36: #{gradient_loss.1} parent=27 // pred_fallthru
          _
        %s200 = sand.u32 %s41, 1
        %s201 = scalar_lea.sflag [#allocation6], %s200
        %s202 = sand.u32 %s41, 1
        %s203 = smul.addr %s202, 64
        %s204 = scalar_lea.vmem [#allocation5], %s203
        %p205 = pneg %p54
        %p206 = pneg %p51
        %s207 = sand.u32 %s69, 1
        %s208 = scalar_lea.sflag [#allocation8], %s207
        %s209 = sand.u32 %s69, 1
        %s210 = smul.addr %s209, 64
        %s211 = scalar_lea.vmem [#allocation7], %s210
        %p212 = pneg %p82
        %p213 = pneg %p79
        %p214 = pneg %p108
        %p215 = pneg %p105
        %p216 = scmp.lt.s32.totalorder %s23, 1
        %s217 = scalar_select %p216, %s23, 1
        %s218 = scalar_lea.vmem %s2, %s217
        %s219 = smul.u32 4, %s23
        %s220 = smul.u32 2, %s24
        %s221 = smul.u32 4, %s23
        %s222 = smul.u32 2, %s24
        %p223 = scmp.lt.s32.totalorder %s23, 1
        %s224 = scalar_select %p223, %s23, 1
        %s225 = scalar_lea.vmem %s2, %s224
        %p226 = scmp.eq.s32.totalorder %s24, 0
        // Predicated region
        $region37: #{gradient_loss.1} parent=27 // pred_check
          %p227 = pneg %p226
        $region38: #{gradient_loss.1} parent=27 // pred_check_branch
          %229 = sbr.rel (%p227) target = $region40
        $region39: #{gradient_loss.1} parent=27 // pred_region
          %vm230 = vcmask 130048
          %231 = vst.msk [vmem:[#allocation2] sm:$0xff] %vm230, 0.0
          %232 = vst.msk [vmem:[#allocation2 + $0x8] sm:$0xff] %vm230, 0.0
          %233 = vst.msk [vmem:[#allocation3] sm:$0xff] %vm230, 0.0
          %234 = vst.msk [vmem:[#allocation3 + $0x8] sm:$0xff] %vm230, 0.0
        $region40: #{gradient_loss.1} parent=27 // pred_fallthru
          _
        %v235 = vld [vmem:[%s186] sm:$0xff]
        %v236 = vld [vmem:[%s186 + $0x8] sm:$0xff]
        %v237 = vld [vmem:[%s186 + $0x10] sm:$0xff]
        %v238 = vld [vmem:[%s186 + $0x18] sm:$0xff]
        %v239 = vld [vmem:[%s186 + $0x20] sm:$0xff]
        %v240 = vld [vmem:[%s186 + $0x28] sm:$0xff]
        %v241 = vld [vmem:[%s186 + $0x30] sm:$0xff]
        %v242 = vld [vmem:[%s186 + $0x38] sm:$0xff]
        %v243 = vld [vmem:[%s195] sm:$0xff]
        %v244 = vld [vmem:[%s195 + $0x8] sm:$0xff]
        %v245 = vld [vmem:[%s195 + $0x10] sm:$0xff]
        %v246 = vld [vmem:[%s195 + $0x18] sm:$0xff]
        %v247 = vld [vmem:[%s195 + $0x20] sm:$0xff]
        %v248 = vld [vmem:[%s195 + $0x28] sm:$0xff]
        %v249 = vld [vmem:[%s195 + $0x30] sm:$0xff]
        %v250 = vld [vmem:[%s195 + $0x38] sm:$0xff]
        %v251 = vsub.f32 %v235, %v243
        %v252 = vsub.f32 %v236, %v244
        %v253 = vsub.f32 %v237, %v245
        %v254 = vsub.f32 %v238, %v246
        %v255 = vsub.f32 %v239, %v247
        %v256 = vsub.f32 %v240, %v248
        %v257 = vsub.f32 %v241, %v249
        %v258 = vsub.f32 %v242, %v250
        %vm267 = vcmask 1040384
        %v268 = vrot.slane %v251, 7
        %v269 = vrot.slane %v252, 7
        %v270 = vsel %vm267, %v268, %v269
        %v271 = vrot.slane %v253, 7
        %v272 = vrot.slane %v254, 7
        %v273 = vsel %vm267, %v271, %v272
        %v274 = vrot.slane %v255, 7
        %v275 = vrot.slane %v256, 7
        %v276 = vsel %vm267, %v274, %v275
        %v277 = vrot.slane %v257, 7
        %v278 = vrot.slane %v258, 7
        %v279 = vsel %vm267, %v277, %v278
        %v288 = vsub.f32 %v251, %v268
        %v289 = vsub.f32 %v252, %v270
        %v290 = vsub.f32 %v253, %v271
        %v291 = vsub.f32 %v254, %v273
        %v292 = vsub.f32 %v255, %v274
        %v293 = vsub.f32 %v256, %v276
        %v294 = vsub.f32 %v257, %v277
        %v295 = vsub.f32 %v258, %v279
        %v296 = vand.u32 2147483647, %v288
        %v297 = vand.u32 2147483647, %v289
        %v298 = vand.u32 2147483647, %v290
        %v299 = vand.u32 2147483647, %v291
        %v300 = vand.u32 2147483647, %v292
        %v301 = vand.u32 2147483647, %v293
        %v302 = vand.u32 2147483647, %v294
        %v303 = vand.u32 2147483647, %v295
        %v304 = vld [vmem:[#allocation2] sm:$0xff]
        %v305 = vld [vmem:[#allocation2 + $0x8] sm:$0x7f]
        %vm306 = vcmask 130049
        %v307 = vsel %vm306, %v296, 0.0
        %v308 = vsel %vm306, %v298, 0.0
        %v309 = vadd.f32 %v307, %v308
        %v310 = vsel %vm306, %v300, 0.0
        %v311 = vadd.f32 %v309, %v310
        %v312 = vsel %vm306, %v302, 0.0
        %v313 = vadd.f32 %v311, %v312
        %vm314 = vcmask 130048
        %v315 = vsel %vm314, %v297, 0.0
        %v316 = vsel %vm314, %v299, 0.0
        %v317 = vadd.f32 %v315, %v316
        %v318 = vsel %vm314, %v301, 0.0
        %v319 = vadd.f32 %v317, %v318
        %v320 = vsel %vm314, %v303, 0.0
        %v321 = vadd.f32 %v319, %v320
        %vm324 = vcmask 1046528
        %v325 = vrot.slane %v313, 1
        %v326 = vrot.slane %v321, 1
        %v327 = vsel %vm324, %v325, %v326
        %v330 = vadd.f32 %v304, %v327
        %v331 = vadd.f32 %v305, %v326
        %332 = vst.msk [vmem:[#allocation2] sm:$0xff] %vm314, %v330
        %vm333 = vcmask 129024
        %334 = vst.msk [vmem:[#allocation2 + $0x8] sm:$0x7f] %vm333, %v331
        %335 = vrot.lane.b32.xlu0 %v251, 1
        %v336 = vpop.permute.xlu0 %335
        %337 = vrot.lane.b32.xlu0 %v252, 1
        %v338 = vpop.permute.xlu0 %337
        %339 = vrot.lane.b32.xlu0 %v253, 1
        %v340 = vpop.permute.xlu0 %339
        %341 = vrot.lane.b32.xlu0 %v254, 1
        %v342 = vpop.permute.xlu0 %341
        %343 = vrot.lane.b32.xlu0 %v255, 1
        %v344 = vpop.permute.xlu0 %343
        %345 = vrot.lane.b32.xlu0 %v256, 1
        %v346 = vpop.permute.xlu0 %345
        %347 = vrot.lane.b32.xlu0 %v257, 1
        %v348 = vpop.permute.xlu0 %347
        %349 = vrot.lane.b32.xlu0 %v258, 1
        %v350 = vpop.permute.xlu0 %349
        %v359 = vsub.f32 %v251, %v336
        %v360 = vsub.f32 %v252, %v338
        %v361 = vsub.f32 %v253, %v340
        %v362 = vsub.f32 %v254, %v342
        %v363 = vsub.f32 %v255, %v344
        %v364 = vsub.f32 %v256, %v346
        %v365 = vsub.f32 %v257, %v348
        %v366 = vsub.f32 %v258, %v350
        %v367 = vand.u32 2147483647, %v359
        %v368 = vand.u32 2147483647, %v360
        %v369 = vand.u32 2147483647, %v361
        %v370 = vand.u32 2147483647, %v362
        %v371 = vand.u32 2147483647, %v363
        %v372 = vand.u32 2147483647, %v364
        %v373 = vand.u32 2147483647, %v365
        %v374 = vand.u32 2147483647, %v366
        %v375 = vld [vmem:[#allocation3] sm:$0xff]
        %v376 = vld [vmem:[#allocation3 + $0x8] sm:$0xff]
        %vm377 = vcmask 130056
        %v378 = vsel %vm377, %v367, 0.0
        %v379 = vsel %vm377, %v369, 0.0
        %v380 = vadd.f32 %v378, %v379
        %v381 = vsel %vm377, %v371, 0.0
        %v382 = vadd.f32 %v380, %v381
        %v383 = vsel %vm377, %v373, 0.0
        %v384 = vadd.f32 %v382, %v383
        %v385 = vsel %vm377, %v368, 0.0
        %v386 = vsel %vm377, %v370, 0.0
        %v387 = vadd.f32 %v385, %v386
        %v388 = vsel %vm377, %v372, 0.0
        %v389 = vadd.f32 %v387, %v388
        %v390 = vsel %vm377, %v374, 0.0
        %v391 = vadd.f32 %v389, %v390
        %394 = vrot.lane.b32.xlu0 %v384, 127
        %v395 = vpop.permute.xlu0 %394
        %396 = vrot.lane.b32.xlu0 %v391, 127
        %v397 = vpop.permute.xlu0 %396
        %v400 = vadd.f32 %v375, %v395
        %v401 = vadd.f32 %v376, %v397
        %vm402 = vcmask 121856
        %403 = vst.msk [vmem:[#allocation3] sm:$0xff] %vm402, %v400
        %404 = vst.msk [vmem:[#allocation3 + $0x8] sm:$0xff] %vm402, %v401
        // Predicated region
        $region41: #{gradient_loss.1} parent=27 // pred_check
          %p405 = pneg %p226
        $region42: #{gradient_loss.1} parent=27 // pred_check_branch
          %407 = sbr.rel (%p405) target = $region44
        $region43: #{gradient_loss.1} parent=27 // pred_region
          %v408 = vld [vmem:[#allocation2] sm:$0xff]
          %v409 = vld [vmem:[#allocation2 + $0x8] sm:$0xff]
          %v410 = vsel %vm314, %v408, 0.0
          %v411 = vsel %vm314, %v409, 0.0
          %v412 = vadd.f32 %v410, %v411
          %413 = vadd.xlane.f32.xlu0 %v412
          %v414 = vpop.xlane.xlu0 %413
          %v415 = vrot.slane %v414, 4
          %v416 = vadd.f32 %v414, %v415
          %v417 = vrot.slane %v416, 2
          %v418 = vadd.f32 %v416, %v417
          %v419 = vrot.slane %v418, 1
          %v420 = vadd.f32 %v418, %v419
          %s421 = vtos %v420
          %v422 = vld [vmem:[#allocation3] sm:$0xff]
          %v423 = vld [vmem:[#allocation3 + $0x8] sm:$0xff]
          %v424 = vsel %vm314, %v422, 0.0
          %v425 = vsel %vm314, %v423, 0.0
          %v426 = vadd.f32 %v424, %v425
          %427 = vadd.xlane.f32.xlu0 %v426
          %v428 = vpop.xlane.xlu0 %427
          %v429 = vrot.slane %v428, 4
          %v430 = vadd.f32 %v428, %v429
          %v431 = vrot.slane %v430, 2
          %v432 = vadd.f32 %v430, %v431
          %v433 = vrot.slane %v432, 1
          %v434 = vadd.f32 %v432, %v433
          %s435 = vtos %v434
          %v436 = vlaneseq
          %v437 = vand.u32 %v436, 127
          %vm438 = vcmp.eq.s32.totalorder %v437, 0
          %vm439 = vcmp.eq.s32.totalorder %v437, 1
          %v440 = vstv %s435
          %v441 = vsel %vm439, %v440, 0.0
          %v442 = vstv %s421
          %v443 = vsel %vm438, %v442, %v441
          %444 = vst [vmem:[%s225] sm:$0x1] %v443
        $region44: #{gradient_loss.1} parent=27 // pred_fallthru
          _
        %p445 = scmp.lt.s32.totalorder %s23, 1
        %s446 = scalar_select %p445, %s23, 1
        %s447 = scalar_lea.vmem %s2, %s446
        // Predicated region
        $region45: #{gradient_loss.1} parent=27 // pred_check
          %p448 = pneg %p105
        $region46: #{gradient_loss.1} parent=27 // pred_check_branch
          %450 = sbr.rel (%p448) target = $region48
        $region47: #{gradient_loss.1} parent=27 // pred_region
          _
        $region48: #{gradient_loss.1} parent=27 // pred_fallthru
          _
      $region28: #{gradient_loss.1} parent=5 // pred_fallthru
        _
      %p451 = scmp.le.s32.totalorder 2, %s14
      // Predicated region
      $region49: #{gradient_loss.1} parent=5 // pred_check
        %p452 = pneg %p451
      $region50: #{gradient_loss.1} parent=5 // pred_check_branch
        %454 = sbr.rel (%p452) target = $region52
      $region51: #{gradient_loss.1} parent=5 // pred_region
        %s455 = ssub.s32 %s14, 2
        // Predicated region
        $region53: #{gradient_loss.1} parent=51 // pred_check
          %p456 = pneg %p111
        $region54: #{gradient_loss.1} parent=51 // pred_check_branch
          %458 = sbr.rel (%p456) target = $region56
        $region55: #{gradient_loss.1} parent=51 // pred_region
          %p459 = scmp.lt.s32.totalorder %s25, 1
          %s460 = scalar_select %p459, %s25, 1
          %s461 = scalar_lea.vmem %s2, %s460
        $region56: #{gradient_loss.1} parent=51 // pred_fallthru
          _
      $region52: #{gradient_loss.1} parent=5 // pred_fallthru
        _
    $region6: #{gradient_loss.1} parent=1 // loop_footer
      %s18 = sadd.s32 1, %s14
    $region7: #{gradient_loss.1} parent=1 // loop_footer_branch
      %13 = sbr.rel target = $region3
    $region8: #{gradient_loss.1} parent=1 // loop_exit
      _
    %462 = vsyncpa [#allocation6], 1
    %s463 = scalar_lea.sflag [#allocation6], 1
    %464 = vsyncpa %s463, 1
    %465 = vsyncpa [#allocation8], 1
    %s466 = scalar_lea.sflag [#allocation8], 1
    %467 = vsyncpa %s466, 1

</llo_original>
